<compile_context>
chip_gen: v6e
topology: v6e:2x2x1
jax: 0.10.0
libtpu: 0.0.40
codegen_flags: <defaults>
</compile_context>

<pallas_src>
import functools

import jax
import jax.numpy as jnp
from jax.experimental import pallas as pl
from jax.experimental.pallas import tpu as pltpu

HIDDEN = 64
FUSED = 2 * HIDDEN  # 128 — fused hidden width (policy | value), one full lane tile


def fused_policy_kernel(x_ref, w1_ref, w23_ref, bias_ref, out_ref, *, action_size):
    x = x_ref[...]                                   # [TB, S]
    b1 = bias_ref[0:1, :]                            # [1, 128]
    b2 = bias_ref[1:2, :]
    b3 = bias_ref[2:3, :]

    # Layer 1 (both heads): [TB, S] @ [S, 128]
    h = jnp.dot(x, w1_ref[...], preferred_element_type=jnp.float32) + b1
    h = jnp.maximum(h, 0.0)
    # Layer 2 (block-diagonal, no cross-head mixing): [TB, 128] @ [128, 128]
    h = jnp.dot(h, w23_ref[0], preferred_element_type=jnp.float32) + b2
    h = jnp.maximum(h, 0.0)
    # Layer 3: lanes 0..A-1 = policy logits, lane A = value, lanes A+1.. = 0
    y = jnp.dot(h, w23_ref[1], preferred_element_type=jnp.float32) + b3

    # Masked softmax over the action lanes only (value lane excluded).
    lane = jax.lax.broadcasted_iota(jnp.int32, y.shape, dimension=1)
    is_logit = lane < action_size
    masked = jnp.where(is_logit, y, jnp.float32(-1e30))
    m = jnp.max(masked, axis=-1, keepdims=True)
    e = jnp.exp(masked - m)                          # exp underflows to 0 off-mask
    denom = jnp.sum(e, axis=-1, keepdims=True)
    probs = e * pl.reciprocal(denom, approx=False)

    # Single lane-dense store: probs in action lanes, raw y (value / zeros) elsewhere.
    out_ref[...] = jnp.where(is_logit, probs, y).astype(out_ref.dtype)


def pack_params(p, action_size):
    """Fuse the per-layer policy/value weights into 3 lane-128 matmul operands."""
    assert action_size + 1 <= FUSED, "action_size must fit in the fused output tile"
    # Layer 1: concat along output features.
    w1f = jnp.concatenate([p["w1"], p["vw1"]], axis=1)            # [S, 128]
    b1f = jnp.concatenate([p["b1"], p["vb1"]], axis=1)            # [1, 128]
    # Layer 2: strictly block-diagonal (zeros off-diagonal -> no cross-head mixing).
    z = jnp.zeros((HIDDEN, HIDDEN), jnp.float32)
    w2f = jnp.block([[p["w2"], z], [z, p["vw2"]]])                # [128, 128]
    b2f = jnp.concatenate([p["b2"], p["vb2"]], axis=1)            # [1, 128]
    # Layer 3: policy hidden -> lanes [0, A), value hidden -> lane A, rest zero.
    w3f = jnp.zeros((FUSED, FUSED), jnp.float32)
    w3f = w3f.at[:HIDDEN, :action_size].set(p["w3"])
    w3f = w3f.at[HIDDEN:, action_size:action_size + 1].set(p["vw3"])
    b3f = jnp.zeros((1, FUSED), jnp.float32)
    b3f = b3f.at[:, :action_size].set(p["b3"])
    b3f = b3f.at[:, action_size:action_size + 1].set(p["vb3"])

    w23f = jnp.stack([w2f, w3f], axis=0)                          # [2, 128, 128]
    biasf = jnp.concatenate([b1f, b2f, b3f], axis=0)              # [3, 128]
    return w1f, w23f, biasf


def policy_network_forward(x, packed, action_size):
    """x: [B, state_size] f32. packed: output of pack_params. Returns (probs, value)."""
    w1f, w23f, biasf = packed
    B, S = x.shape
    assert w1f.shape == (S, FUSED)

    # Batch tiling: single step at small B; tile + parallel grid at large B
    # (shards across the 2 TensorCores on v7x, pipelines x tiles everywhere).
    if B <= 256:
        tb = B
        x_in = x
    else:
        tb = 128
        pad = (-B) % tb
        x_in = jnp.pad(x, ((0, pad), (0, 0)))
    bp = x_in.shape[0]
    grid = (bp // tb,)

    kernel = functools.partial(fused_policy_kernel, action_size=action_size)

    out = pl.pallas_call(
        kernel,
        out_shape=jax.ShapeDtypeStruct((bp, FUSED), jnp.float32),
        grid=grid,
        in_specs=[
            pl.BlockSpec((tb, S), lambda i: (i, 0)),
            pl.BlockSpec((S, FUSED), lambda i: (0, 0)),
            pl.BlockSpec((2, FUSED, FUSED), lambda i: (0, 0, 0)),
            pl.BlockSpec((3, FUSED), lambda i: (0, 0)),
        ],
        out_specs=pl.BlockSpec((tb, FUSED), lambda i: (i, 0)),
        compiler_params=pltpu.CompilerParams(
            dimension_semantics=("parallel",),
        ),
    )(x_in, w1f, w23f, biasf)

    probs = out[:B, :action_size]
    value = out[:B, action_size:action_size + 1]
    return probs, value


def init_params(key, state_size, action_size):
    """Deterministic synthetic initialization (shapes match the nn.Linear layers)."""
    ks = jax.random.split(key, 12)

    def lin(kw, kb, fan_in, fan_out):
        scale = 1.0 / jnp.sqrt(jnp.float32(fan_in))
        w = jax.random.uniform(kw, (fan_in, fan_out), jnp.float32, -scale, scale)
        b = jax.random.uniform(kb, (1, fan_out), jnp.float32, -scale, scale)
        return w, b

    w1, b1 = lin(ks[0], ks[1], state_size, HIDDEN)
    w2, b2 = lin(ks[2], ks[3], HIDDEN, HIDDEN)
    w3, b3 = lin(ks[4], ks[5], HIDDEN, action_size)
    vw1, vb1 = lin(ks[6], ks[7], state_size, HIDDEN)
    vw2, vb2 = lin(ks[8], ks[9], HIDDEN, HIDDEN)
    vw3, vb3 = lin(ks[10], ks[11], HIDDEN, 1)

    return dict(w1=w1, b1=b1, w2=w2, b2=b2, w3=w3, b3=b3,
                vw1=vw1, vb1=vb1, vw2=vw2, vb2=vb2, vw3=vw3, vb3=vb3)


def reference_forward(x, p):
    h = jax.nn.relu(x @ p["w1"] + p["b1"])
    h = jax.nn.relu(h @ p["w2"] + p["b2"])
    probs = jax.nn.softmax(h @ p["w3"] + p["b3"], axis=-1)
    v = jax.nn.relu(x @ p["vw1"] + p["vb1"])
    v = jax.nn.relu(v @ p["vw2"] + p["vb2"])
    value = v @ p["vw3"] + p["vb3"]
    return probs, value


if __name__ == "__main__":
    key = jax.random.PRNGKey(0)
    k_x, k_p = jax.random.split(key)

    B, state_size, action_size = 8, 32, 8
    x = jax.random.normal(k_x, (B, state_size), dtype=jnp.float32)
    params = init_params(k_p, state_size, action_size)

    # Pack (fuse) parameters once, outside the hot path.
    packed = pack_params(params, action_size)

    probs, value = policy_network_forward(x, packed, action_size)
    probs, value = jax.block_until_ready((probs, value))

    ref_probs, ref_value = reference_forward(x, params)
    assert probs.shape == (B, action_size)
    assert value.shape == (B, 1)
    assert jnp.allclose(probs, ref_probs, atol=1e-5, rtol=1e-5)
    assert jnp.allclose(value, ref_value, atol=1e-5, rtol=1e-5)
    assert jnp.allclose(jnp.sum(probs, axis=-1), 1.0, atol=1e-5)

    print("KERNEL_OK")
</pallas_src>

<mosaic_0001>
module attributes {stable_mosaic.version = 11 : i64} {
  func.func @fused_policy_kernel(%arg0: i32, %arg1: memref<8x32xf32, #tpu.memory_space<vmem>>, %arg2: memref<32x128xf32, #tpu.memory_space<vmem>>, %arg3: memref<2x128x128xf32, #tpu.memory_space<vmem>>, %arg4: memref<3x128xf32, #tpu.memory_space<vmem>>, %arg5: memref<8x128xf32, #tpu.memory_space<vmem>>) attributes {dimension_semantics = [#tpu.dimension_semantics<parallel>], iteration_bounds = array<i64: 1>, scalar_prefetch = 0 : i64, scratch_operands = 0 : i64, tpu.core_type = #tpu.core_type<tc>, window_params = [{transform_indices = @transform_0, window_bounds = array<i64: 8, 32>}, {pipeline_mode = #tpu.pipeline_mode<synchronous>, transform_indices = @transform_1, window_bounds = array<i64: 32, 128>}, {pipeline_mode = #tpu.pipeline_mode<synchronous>, transform_indices = @transform_2, window_bounds = array<i64: 2, 128, 128>}, {pipeline_mode = #tpu.pipeline_mode<synchronous>, transform_indices = @transform_3, window_bounds = array<i64: 3, 128>}, {transform_indices = @transform_4, window_bounds = array<i64: 8, 128>}]} {
    %c0 = arith.constant 0 : index
    %c0_0 = arith.constant 0 : index
    %0 = vector.load %arg1[%c0, %c0_0] : memref<8x32xf32, #tpu.memory_space<vmem>>, vector<8x32xf32>
    %c0_1 = arith.constant 0 : index
    %c0_2 = arith.constant 0 : index
    %1 = vector.load %arg4[%c0_1, %c0_2] : memref<3x128xf32, #tpu.memory_space<vmem>>, vector<1x128xf32>
    %c1 = arith.constant 1 : index
    %c0_3 = arith.constant 0 : index
    %2 = vector.load %arg4[%c1, %c0_3] : memref<3x128xf32, #tpu.memory_space<vmem>>, vector<1x128xf32>
    %c2 = arith.constant 2 : index
    %c0_4 = arith.constant 0 : index
    %3 = vector.load %arg4[%c2, %c0_4] : memref<3x128xf32, #tpu.memory_space<vmem>>, vector<1x128xf32>
    %c0_5 = arith.constant 0 : index
    %c0_6 = arith.constant 0 : index
    %4 = vector.load %arg2[%c0_5, %c0_6] : memref<32x128xf32, #tpu.memory_space<vmem>>, vector<32x128xf32>
    %cst = arith.constant dense<0.000000e+00> : vector<8x128xf32>
    %5 = tpu.matmul %0, %4, %cst {dimension_numbers = #tpu.dot_dimension_numbers<[1], [0], [0], [1], [0, 0, 1, 1], [], []>} : vector<8x32xf32>, vector<32x128xf32>, vector<8x128xf32> -> vector<8x128xf32>
    %6 = vector.broadcast %1 : vector<1x128xf32> to vector<8x128xf32>
    %7 = arith.addf %5, %6 : vector<8x128xf32>
    %cst_7 = arith.constant 0.000000e+00 : f32
    %8 = vector.broadcast %cst_7 : f32 to vector<8x128xf32>
    %9 = arith.maximumf %7, %8 : vector<8x128xf32>
    %c0_8 = arith.constant 0 : index
    %c0_9 = arith.constant 0 : index
    %c0_10 = arith.constant 0 : index
    %10 = vector.load %arg3[%c0_8, %c0_9, %c0_10] : memref<2x128x128xf32, #tpu.memory_space<vmem>>, vector<1x128x128xf32>
    %11 = vector.shape_cast %10 : vector<1x128x128xf32> to vector<128x128xf32>
    %cst_11 = arith.constant dense<0.000000e+00> : vector<8x128xf32>
    %12 = tpu.matmul %9, %11, %cst_11 {dimension_numbers = #tpu.dot_dimension_numbers<[1], [0], [0], [1], [0, 0, 1, 1], [], []>} : vector<8x128xf32>, vector<128x128xf32>, vector<8x128xf32> -> vector<8x128xf32>
    %13 = vector.broadcast %2 : vector<1x128xf32> to vector<8x128xf32>
    %14 = arith.addf %12, %13 : vector<8x128xf32>
    %cst_12 = arith.constant 0.000000e+00 : f32
    %15 = vector.broadcast %cst_12 : f32 to vector<8x128xf32>
    %16 = arith.maximumf %14, %15 : vector<8x128xf32>
    %c1_13 = arith.constant 1 : index
    %c0_14 = arith.constant 0 : index
    %c0_15 = arith.constant 0 : index
    %17 = vector.load %arg3[%c1_13, %c0_14, %c0_15] : memref<2x128x128xf32, #tpu.memory_space<vmem>>, vector<1x128x128xf32>
    %18 = vector.shape_cast %17 : vector<1x128x128xf32> to vector<128x128xf32>
    %cst_16 = arith.constant dense<0.000000e+00> : vector<8x128xf32>
    %19 = tpu.matmul %16, %18, %cst_16 {dimension_numbers = #tpu.dot_dimension_numbers<[1], [0], [0], [1], [0, 0, 1, 1], [], []>} : vector<8x128xf32>, vector<128x128xf32>, vector<8x128xf32> -> vector<8x128xf32>
    %20 = vector.broadcast %3 : vector<1x128xf32> to vector<8x128xf32>
    %21 = arith.addf %19, %20 : vector<8x128xf32>
    %22 = tpu.iota {dimensions = array<i32: 1>} : vector<8x128xi32>
    %c8_i32 = arith.constant 8 : i32
    %23 = vector.broadcast %c8_i32 : i32 to vector<8x128xi32>
    %24 = arith.cmpi slt, %22, %23 : vector<8x128xi32>
    %cst_17 = arith.constant -1.000000e+30 : f32
    %25 = vector.broadcast %cst_17 : f32 to vector<8x128xf32>
    %26 = arith.select %24, %21, %25 : vector<8x128xi1>, vector<8x128xf32>
    %cst_18 = arith.constant dense<0xFF800000> : vector<8xf32>
    %27 = vector.multi_reduction <maximumf>, %26, %cst_18 [1] : vector<8x128xf32> to vector<8xf32>
    %28 = vector.shape_cast %27 : vector<8xf32> to vector<8x1xf32>
    %29 = vector.broadcast %28 : vector<8x1xf32> to vector<8x128xf32>
    %30 = arith.subf %26, %29 : vector<8x128xf32>
    %31 = math.exp %30 : vector<8x128xf32>
    %cst_19 = arith.constant dense<0.000000e+00> : vector<8xf32>
    %32 = vector.multi_reduction <add>, %31, %cst_19 [1] : vector<8x128xf32> to vector<8xf32>
    %33 = vector.shape_cast %32 : vector<8xf32> to vector<8x1xf32>
    %34 = tpu.reciprocal %33 : vector<8x1xf32> -> vector<8x1xf32>
    %35 = vector.broadcast %34 : vector<8x1xf32> to vector<8x128xf32>
    %36 = arith.mulf %31, %35 : vector<8x128xf32>
    %37 = arith.select %24, %36, %21 : vector<8x128xi1>, vector<8x128xf32>
    %c0_20 = arith.constant 0 : index
    %c0_21 = arith.constant 0 : index
    %38 = vector.load %arg5[%c0_20, %c0_21] : memref<8x128xf32, #tpu.memory_space<vmem>>, vector<8x128xf32>
    tpu.vector_store %arg5[%c0_20, %c0_21], %37 {strides = array<i32>} : memref<8x128xf32, #tpu.memory_space<vmem>>, vector<8x128xf32>,
    return
  }
  func.func @transform_0(%arg0: i32) -> (i32, i32) {
    %c0_i32 = arith.constant 0 : i32
    %c0_i32_0 = arith.constant 0 : i32
    return %arg0, %c0_i32 : i32, i32
  }
  func.func @transform_1(%arg0: i32) -> (i32, i32) {
    %c0_i32 = arith.constant 0 : i32
    %c0_i32_0 = arith.constant 0 : i32
    %c0_i32_1 = arith.constant 0 : i32
    return %c0_i32, %c0_i32_0 : i32, i32
  }
  func.func @transform_2(%arg0: i32) -> (i32, i32, i32) {
    %c0_i32 = arith.constant 0 : i32
    %c0_i32_0 = arith.constant 0 : i32
    %c0_i32_1 = arith.constant 0 : i32
    %c0_i32_2 = arith.constant 0 : i32
    return %c0_i32, %c0_i32_0, %c0_i32_1 : i32, i32, i32
  }
  func.func @transform_3(%arg0: i32) -> (i32, i32) {
    %c0_i32 = arith.constant 0 : i32
    %c0_i32_0 = arith.constant 0 : i32
    %c0_i32_1 = arith.constant 0 : i32
    return %c0_i32, %c0_i32_0 : i32, i32
  }
  func.func @transform_4(%arg0: i32) -> (i32, i32) {
    %c0_i32 = arith.constant 0 : i32
    %c0_i32_0 = arith.constant 0 : i32
    return %arg0, %c0_i32 : i32, i32
  }
}

</mosaic_0001>

<llo_original>
// kernel: tpu_custom_call.1
$region0: #{tpu_custom_call.1}
  #allocation0 [shape = 'u32[]', space=smem, size = 0x4, offset = 0x4, fixed_abs, tag = 'smem constant byte address 0x4 - core index']
  #allocation1 [shape = 'u32[144,128]{1,0:T(1,128)}', space=vmem, size = 0x12000, scoped, tag = 'internal scratch']
  %s0 = inlined_call_operand.hbm [shape: f32[8,32], index: 0, kind: input, shape index: {}]
  %s1 = inlined_call_operand.hbm [shape: f32[32,128], index: 1, kind: input, shape index: {}]
  %s2 = inlined_call_operand.hbm [shape: f32[2,128,128], index: 2, kind: input, shape index: {}]
  %s3 = inlined_call_operand.vmem [shape: f32[3,128], index: 3, kind: input, shape index: {}]
  %s4 = inlined_call_operand.hbm [shape: f32[8,128], index: 4, kind: output, shape index: {}]
  %s5 = sld [smem:[#allocation0]]
  $region38: #{tpu_custom_call.1} parent=0
    _
  %s7 = ssub.s32 1, %s5
  %s8 = scalar_select 0, %s7, %s5
  $region1: #{tpu_custom_call.1} parent=0
    #allocation2 [shape = 'u8[4096]{0}', space=vmem, size = 0x1000, scoped, tag = 'input window, operand 0, single buffered']
    #allocation3 [shape = 's32[1]{0}', space=sflag, size = 0x4, scoped, tag = 'scoped memory for tpu_custom_call.1']
    #allocation4 [shape = 's32[1]{0}', space=sflag, size = 0x4, scoped, tag = 'scoped memory for tpu_custom_call.1']
    #allocation5 [shape = 'u8[16384]{0}', space=vmem, size = 0x4000, scoped, tag = 'input window, operand 1, single buffered']
    #allocation6 [shape = 's32[1]{0}', space=sflag, size = 0x4, scoped, tag = 'scoped memory for tpu_custom_call.1']
    #allocation7 [shape = 'u8[131072]{0}', space=vmem, size = 0x20000, scoped, tag = 'input window, operand 2, single buffered']
    #allocation8 [shape = 'u8[4096]{0}', space=vmem, size = 0x1000, scoped, tag = 'output window, operand 0, single buffered']
    %9 = vsyncpa [#allocation3], 0
    %10 = vsyncpa [#allocation6], 0
    %11 = vsyncpa [#allocation4], 0
    // Predicated region
    $region2: #{tpu_custom_call.1} parent=1 // pred_check
      _
    $region3: #{tpu_custom_call.1} parent=1 // pred_check_branch
      %13 = sbr.rel (0) target = $region5
    $region4: #{tpu_custom_call.1} parent=1 // pred_region
      %s15 = ssub.s32 128, 128
      %16 = vsyncadd [#allocation3], %s15
      %s18 = sshll.u32 [#allocation2], 4
      %s19 = int_to_ptr.vmem [resolvable:$true] %s18
      %21 = dma.hbm_to_vmem [thread:$0]  %s0, 128, %s19, [#allocation3]
    $region5: #{tpu_custom_call.1} parent=1 // pred_fallthru
      _
    // Predicated region
    $region6: #{tpu_custom_call.1} parent=1 // pred_check
      _
    $region7: #{tpu_custom_call.1} parent=1 // pred_check_branch
      %23 = sbr.rel (0) target = $region9
    $region8: #{tpu_custom_call.1} parent=1 // pred_region
      %s25 = ssub.s32 512, 512
      %26 = vsyncadd [#allocation6], %s25
      %s27 = sshll.u32 [#allocation5], 4
      %s28 = int_to_ptr.vmem [resolvable:$true] %s27
      %33 = dma.hbm_to_vmem [thread:$0]  %s1, 512, %s28, [#allocation6], 128, 128, 8
    $region9: #{tpu_custom_call.1} parent=1 // pred_fallthru
      _
    // Predicated region
    $region10: #{tpu_custom_call.1} parent=1 // pred_check
      _
    $region11: #{tpu_custom_call.1} parent=1 // pred_check_branch
      %35 = sbr.rel (0) target = $region13
    $region12: #{tpu_custom_call.1} parent=1 // pred_region
      %s37 = ssub.s32 4096, 4096
      %38 = vsyncadd [#allocation6], %s37
      %s39 = sshll.u32 [#allocation7], 4
      %s40 = int_to_ptr.vmem [resolvable:$true] %s39
      %45 = dma.hbm_to_vmem [thread:$0]  %s2, 4096, %s40, [#allocation6], 128, 128, 8
    $region13: #{tpu_custom_call.1} parent=1 // pred_fallthru
      _
    // Predicated region
    $region14: #{tpu_custom_call.1} parent=1 // pred_check
      _
    $region15: #{tpu_custom_call.1} parent=1 // pred_check_branch
      %47 = sbr.rel (0) target = $region17
    $region16: #{tpu_custom_call.1} parent=1 // pred_region
      _
    $region17: #{tpu_custom_call.1} parent=1 // pred_fallthru
      _
    // Predicated region
    $region18: #{tpu_custom_call.1} parent=1 // pred_check
      _
    $region19: #{tpu_custom_call.1} parent=1 // pred_check_branch
      %49 = sbr.rel (0) target = $region21
    $region20: #{tpu_custom_call.1} parent=1 // pred_region
      %50 = dma.done [#allocation3], 128
    $region21: #{tpu_custom_call.1} parent=1 // pred_fallthru
      _
    // Predicated region
    $region22: #{tpu_custom_call.1} parent=1 // pred_check
      _
    $region23: #{tpu_custom_call.1} parent=1 // pred_check_branch
      %52 = sbr.rel (0) target = $region25
    $region24: #{tpu_custom_call.1} parent=1 // pred_region
      %53 = dma.done [#allocation6], 512
    $region25: #{tpu_custom_call.1} parent=1 // pred_fallthru
      _
    // Predicated region
    $region26: #{tpu_custom_call.1} parent=1 // pred_check
      _
    $region27: #{tpu_custom_call.1} parent=1 // pred_check_branch
      %55 = sbr.rel (0) target = $region29
    $region28: #{tpu_custom_call.1} parent=1 // pred_region
      %56 = dma.done [#allocation6], 4096
    $region29: #{tpu_custom_call.1} parent=1 // pred_fallthru
      _
    %v57 = vld [vmem:[#allocation2] sm:$0xff]
    %v58 = vld [vmem:[%s3] sm:$0x1]
    %v59 = vld [vmem:[%s3 + $0x1] sm:$0x1]
    %v60 = vld [vmem:[%s3 + $0x2] sm:$0x1]
    %v61 = vld [vmem:[#allocation5] sm:$0xff]
    %v62 = vld [vmem:[#allocation5 + $0x8] sm:$0xff]
    %v63 = vld [vmem:[#allocation5 + $0x10] sm:$0xff]
    %v64 = vld [vmem:[#allocation5 + $0x18] sm:$0xff]
    %v65 = vlaneseq
    %v66 = vshrl.u32 %v65, 7
    %v67 = vsub.s32 0, %v66
    %v68 = vrot.slane %v58, %v67
    %vm69 = vcmask 261120
    %v71 = vsel %vm69, %v57, 0
    %73 = vmatprep.subr.mxu0 0.0
    %74 = vmatpush1.msra.mxu0 0.0
    %75 = vmatprep.subr.mxu0 0.0
    %76 = vmatpush1.msra.mxu0 0.0
    %77 = vmatprep.subr.mxu0 0.0
    %78 = vmatpush1.msra.mxu0 0.0
    %79 = vmatprep.subr.mxu0 0.0
    %80 = vmatpush1.msra.mxu0 0.0
    %81 = vmatprep.subr.mxu0 0.0
    %82 = vmatpush1.msra.mxu0 0.0
    %83 = vmatprep.subr.mxu0 0.0
    %84 = vmatpush1.msra.mxu0 0.0
    %85 = vmatprep.subr.mxu0 0.0
    %86 = vmatpush1.msra.mxu0 0.0
    %87 = vmatprep.subr.mxu0 0.0
    %88 = vmatpush1.msra.mxu0 0.0
    %89 = vmatprep.subr.mxu0 0.0
    %90 = vmatpush1.msra.mxu0 0.0
    %91 = vmatprep.subr.mxu0 0.0
    %92 = vmatpush1.msra.mxu0 0.0
    %93 = vmatprep.subr.mxu0 0.0
    %94 = vmatpush1.msra.mxu0 0.0
    %95 = vmatprep.subr.mxu0 0.0
    %96 = vmatpush1.msra.mxu0 0.0
    %97 = vmatprep.subr.mxu0 0.0
    %98 = vmatpush1.msra.mxu0 %v64
    %99 = vmatprep.subr.mxu0 0.0
    %100 = vmatpush1.msra.mxu0 %v63
    %101 = vmatprep.subr.mxu0 0.0
    %102 = vmatpush1.msra.mxu0 %v62
    %103 = vmatprep.subr.mxu0 0.0
    %104 = vmatpush1.msra.mxu0 %v61
    %105 = vmatprep.subr.mxu0 0.0
    %106 = vmatpush2.msra.mxu0 0.0
    %107 = vmatprep.subr.mxu0 0.0
    %108 = vmatpush2.msra.mxu0 0.0
    %109 = vmatprep.subr.mxu0 0.0
    %110 = vmatpush2.msra.mxu0 0.0
    %111 = vmatprep.subr.mxu0 0.0
    %112 = vmatpush2.msra.mxu0 0.0
    %113 = vmatprep.subr.mxu0 0.0
    %114 = vmatpush2.msra.mxu0 0.0
    %115 = vmatprep.subr.mxu0 0.0
    %116 = vmatpush2.msra.mxu0 0.0
    %117 = vmatprep.subr.mxu0 0.0
    %118 = vmatpush2.msra.mxu0 0.0
    %119 = vmatprep.subr.mxu0 0.0
    %120 = vmatpush2.msra.mxu0 0.0
    %121 = vmatprep.subr.mxu0 0.0
    %122 = vmatpush2.msra.mxu0 0.0
    %123 = vmatprep.subr.mxu0 0.0
    %124 = vmatpush2.msra.mxu0 0.0
    %125 = vmatprep.subr.mxu0 0.0
    %126 = vmatpush2.msra.mxu0 0.0
    %127 = vmatprep.subr.mxu0 0.0
    %128 = vmatpush2.msra.mxu0 0.0
    %129 = vmatprep.subr.mxu0 0.0
    %130 = vmatpush2.msra.mxu0 0.0
    %131 = vmatprep.subr.mxu0 0.0
    %132 = vmatpush2.msra.mxu0 0.0
    %133 = vmatprep.subr.mxu0 0.0
    %134 = vmatpush2.msra.mxu0 0.0
    %135 = vmatprep.subr.mxu0 0.0
    %136 = vmatpush2.msra.mxu0 0.0
    %137 = vmatprep.mubr.f32.mxu0 0.0
    %138 = vmatmul.mubr.f32.gmra.mxu0 %v71
    %v139 = vpop.f32.mrf.mxu0
    %v140 = vadd.f32 %v68, %v139
    %v141 = vpop.f32.mrf.mxu0
    %142 = vdwg.mxu0
    %v143 = vmax.f32 %v140, 0.0
    %v144 = vld [vmem:[#allocation7] sm:$0xff]
    %v145 = vld [vmem:[#allocation7 + $0x8] sm:$0xff]
    %v146 = vld [vmem:[#allocation7 + $0x10] sm:$0xff]
    %v147 = vld [vmem:[#allocation7 + $0x18] sm:$0xff]
    %v148 = vld [vmem:[#allocation7 + $0x20] sm:$0xff]
    %v149 = vld [vmem:[#allocation7 + $0x28] sm:$0xff]
    %v150 = vld [vmem:[#allocation7 + $0x30] sm:$0xff]
    %v151 = vld [vmem:[#allocation7 + $0x38] sm:$0xff]
    %v152 = vld [vmem:[#allocation7 + $0x40] sm:$0xff]
    %v153 = vld [vmem:[#allocation7 + $0x48] sm:$0xff]
    %v154 = vld [vmem:[#allocation7 + $0x50] sm:$0xff]
    %v155 = vld [vmem:[#allocation7 + $0x58] sm:$0xff]
    %v156 = vld [vmem:[#allocation7 + $0x60] sm:$0xff]
    %v157 = vld [vmem:[#allocation7 + $0x68] sm:$0xff]
    %v158 = vld [vmem:[#allocation7 + $0x70] sm:$0xff]
    %v159 = vld [vmem:[#allocation7 + $0x78] sm:$0xff]
    %v160 = vlaneseq
    %v161 = vshrl.u32 %v160, 7
    %v162 = vsub.s32 0, %v161
    %v163 = vrot.slane %v59, %v162
    %164 = vmatprep.subr.mxu0 0.0
    %165 = vmatpush1.msra.mxu0 %v159
    %166 = vmatprep.subr.mxu0 0.0
    %167 = vmatpush1.msra.mxu0 %v158
    %168 = vmatprep.subr.mxu0 0.0
    %169 = vmatpush1.msra.mxu0 %v157
    %170 = vmatprep.subr.mxu0 0.0
    %171 = vmatpush1.msra.mxu0 %v156
    %172 = vmatprep.subr.mxu0 0.0
    %173 = vmatpush1.msra.mxu0 %v155
    %174 = vmatprep.subr.mxu0 0.0
    %175 = vmatpush1.msra.mxu0 %v154
    %176 = vmatprep.subr.mxu0 0.0
    %177 = vmatpush1.msra.mxu0 %v153
    %178 = vmatprep.subr.mxu0 0.0
    %179 = vmatpush1.msra.mxu0 %v152
    %180 = vmatprep.subr.mxu0 0.0
    %181 = vmatpush1.msra.mxu0 %v151
    %182 = vmatprep.subr.mxu0 0.0
    %183 = vmatpush1.msra.mxu0 %v150
    %184 = vmatprep.subr.mxu0 0.0
    %185 = vmatpush1.msra.mxu0 %v149
    %186 = vmatprep.subr.mxu0 0.0
    %187 = vmatpush1.msra.mxu0 %v148
    %188 = vmatprep.subr.mxu0 0.0
    %189 = vmatpush1.msra.mxu0 %v147
    %190 = vmatprep.subr.mxu0 0.0
    %191 = vmatpush1.msra.mxu0 %v146
    %192 = vmatprep.subr.mxu0 0.0
    %193 = vmatpush1.msra.mxu0 %v145
    %194 = vmatprep.subr.mxu0 0.0
    %195 = vmatpush1.msra.mxu0 %v144
    %196 = vmatprep.subr.mxu0 0.0
    %197 = vmatpush2.msra.mxu0 0.0
    %198 = vmatprep.subr.mxu0 0.0
    %199 = vmatpush2.msra.mxu0 0.0
    %200 = vmatprep.subr.mxu0 0.0
    %201 = vmatpush2.msra.mxu0 0.0
    %202 = vmatprep.subr.mxu0 0.0
    %203 = vmatpush2.msra.mxu0 0.0
    %204 = vmatprep.subr.mxu0 0.0
    %205 = vmatpush2.msra.mxu0 0.0
    %206 = vmatprep.subr.mxu0 0.0
    %207 = vmatpush2.msra.mxu0 0.0
    %208 = vmatprep.subr.mxu0 0.0
    %209 = vmatpush2.msra.mxu0 0.0
    %210 = vmatprep.subr.mxu0 0.0
    %211 = vmatpush2.msra.mxu0 0.0
    %212 = vmatprep.subr.mxu0 0.0
    %213 = vmatpush2.msra.mxu0 0.0
    %214 = vmatprep.subr.mxu0 0.0
    %215 = vmatpush2.msra.mxu0 0.0
    %216 = vmatprep.subr.mxu0 0.0
    %217 = vmatpush2.msra.mxu0 0.0
    %218 = vmatprep.subr.mxu0 0.0
    %219 = vmatpush2.msra.mxu0 0.0
    %220 = vmatprep.subr.mxu0 0.0
    %221 = vmatpush2.msra.mxu0 0.0
    %222 = vmatprep.subr.mxu0 0.0
    %223 = vmatpush2.msra.mxu0 0.0
    %224 = vmatprep.subr.mxu0 0.0
    %225 = vmatpush2.msra.mxu0 0.0
    %226 = vmatprep.subr.mxu0 0.0
    %227 = vmatpush2.msra.mxu0 0.0
    %228 = vmatprep.mubr.f32.mxu0 0.0
    %229 = vmatmul.mubr.f32.gmra.mxu0 %v143
    %v230 = vpop.f32.mrf.mxu0
    %v231 = vadd.f32 %v163, %v230
    %v232 = vpop.f32.mrf.mxu0
    %233 = vdwg.mxu0
    %v234 = vmax.f32 %v231, 0.0
    %s235 = scalar_lea.vmem [#allocation7], 128
    %v236 = vld [vmem:[%s235] sm:$0xff]
    %v237 = vld [vmem:[%s235 + $0x8] sm:$0xff]
    %v238 = vld [vmem:[%s235 + $0x10] sm:$0xff]
    %v239 = vld [vmem:[%s235 + $0x18] sm:$0xff]
    %v240 = vld [vmem:[%s235 + $0x20] sm:$0xff]
    %v241 = vld [vmem:[%s235 + $0x28] sm:$0xff]
    %v242 = vld [vmem:[%s235 + $0x30] sm:$0xff]
    %v243 = vld [vmem:[%s235 + $0x38] sm:$0xff]
    %v244 = vld [vmem:[%s235 + $0x40] sm:$0xff]
    %v245 = vld [vmem:[%s235 + $0x48] sm:$0xff]
    %v246 = vld [vmem:[%s235 + $0x50] sm:$0xff]
    %v247 = vld [vmem:[%s235 + $0x58] sm:$0xff]
    %v248 = vld [vmem:[%s235 + $0x60] sm:$0xff]
    %v249 = vld [vmem:[%s235 + $0x68] sm:$0xff]
    %v250 = vld [vmem:[%s235 + $0x70] sm:$0xff]
    %v251 = vld [vmem:[%s235 + $0x78] sm:$0xff]
    %v252 = vlaneseq
    %v253 = vshrl.u32 %v252, 7
    %v254 = vsub.s32 0, %v253
    %v255 = vrot.slane %v60, %v254
    %256 = vmatprep.subr.mxu0 0.0
    %257 = vmatpush1.msra.mxu0 %v251
    %258 = vmatprep.subr.mxu0 0.0
    %259 = vmatpush1.msra.mxu0 %v250
    %260 = vmatprep.subr.mxu0 0.0
    %261 = vmatpush1.msra.mxu0 %v249
    %262 = vmatprep.subr.mxu0 0.0
    %263 = vmatpush1.msra.mxu0 %v248
    %264 = vmatprep.subr.mxu0 0.0
    %265 = vmatpush1.msra.mxu0 %v247
    %266 = vmatprep.subr.mxu0 0.0
    %267 = vmatpush1.msra.mxu0 %v246
    %268 = vmatprep.subr.mxu0 0.0
    %269 = vmatpush1.msra.mxu0 %v245
    %270 = vmatprep.subr.mxu0 0.0
    %271 = vmatpush1.msra.mxu0 %v244
    %272 = vmatprep.subr.mxu0 0.0
    %273 = vmatpush1.msra.mxu0 %v243
    %274 = vmatprep.subr.mxu0 0.0
    %275 = vmatpush1.msra.mxu0 %v242
    %276 = vmatprep.subr.mxu0 0.0
    %277 = vmatpush1.msra.mxu0 %v241
    %278 = vmatprep.subr.mxu0 0.0
    %279 = vmatpush1.msra.mxu0 %v240
    %280 = vmatprep.subr.mxu0 0.0
    %281 = vmatpush1.msra.mxu0 %v239
    %282 = vmatprep.subr.mxu0 0.0
    %283 = vmatpush1.msra.mxu0 %v238
    %284 = vmatprep.subr.mxu0 0.0
    %285 = vmatpush1.msra.mxu0 %v237
    %286 = vmatprep.subr.mxu0 0.0
    %287 = vmatpush1.msra.mxu0 %v236
    %288 = vmatprep.subr.mxu0 0.0
    %289 = vmatpush2.msra.mxu0 0.0
    %290 = vmatprep.subr.mxu0 0.0
    %291 = vmatpush2.msra.mxu0 0.0
    %292 = vmatprep.subr.mxu0 0.0
    %293 = vmatpush2.msra.mxu0 0.0
    %294 = vmatprep.subr.mxu0 0.0
    %295 = vmatpush2.msra.mxu0 0.0
    %296 = vmatprep.subr.mxu0 0.0
    %297 = vmatpush2.msra.mxu0 0.0
    %298 = vmatprep.subr.mxu0 0.0
    %299 = vmatpush2.msra.mxu0 0.0
    %300 = vmatprep.subr.mxu0 0.0
    %301 = vmatpush2.msra.mxu0 0.0
    %302 = vmatprep.subr.mxu0 0.0
    %303 = vmatpush2.msra.mxu0 0.0
    %304 = vmatprep.subr.mxu0 0.0
    %305 = vmatpush2.msra.mxu0 0.0
    %306 = vmatprep.subr.mxu0 0.0
    %307 = vmatpush2.msra.mxu0 0.0
    %308 = vmatprep.subr.mxu0 0.0
    %309 = vmatpush2.msra.mxu0 0.0
    %310 = vmatprep.subr.mxu0 0.0
    %311 = vmatpush2.msra.mxu0 0.0
    %312 = vmatprep.subr.mxu0 0.0
    %313 = vmatpush2.msra.mxu0 0.0
    %314 = vmatprep.subr.mxu0 0.0
    %315 = vmatpush2.msra.mxu0 0.0
    %316 = vmatprep.subr.mxu0 0.0
    %317 = vmatpush2.msra.mxu0 0.0
    %318 = vmatprep.subr.mxu0 0.0
    %319 = vmatpush2.msra.mxu0 0.0
    %320 = vmatprep.mubr.f32.mxu0 0.0
    %321 = vmatmul.mubr.f32.gmra.mxu0 %v234
    %v322 = vpop.f32.mrf.mxu0
    %v323 = vadd.f32 %v255, %v322
    %v324 = vpop.f32.mrf.mxu0
    %325 = vdwg.mxu0
    %v326 = vlaneseq
    %v327 = vand.u32 %v326, 127
    %vm328 = vcmp.lt.s32.totalorder %v327, 8
    %v329 = vsel %vm328, %v323, -1e+30
    %330 = vmax.xlane.f32.xlu0 %v329
    %v331 = vpop.xlane.xlu0 %330
    %v332 = vsub.f32 %v329, %v331
    %v333 = vmul.f32 %v332, 1.442695
    %v334 = vpow.pop %v333
    %335 = vadd.xlane.f32.xlu0 %v334
    %v336 = vpop.xlane.xlu0 %335
    %v337 = vrcp.pop %v336
    %v338 = vmul.f32 %v334, %v337
    %v339 = vsel %vm328, %v338, %v323
    %340 = vst [vmem:[#allocation8] sm:$0xff] %v339
    // Predicated region
    $region30: #{tpu_custom_call.1} parent=1 // pred_check
      _
    $region31: #{tpu_custom_call.1} parent=1 // pred_check_branch
      %342 = sbr.rel (0) target = $region33
    $region32: #{tpu_custom_call.1} parent=1 // pred_region
      %s344 = ssub.s32 128, 128
      %345 = vsyncadd [#allocation4], %s344
      %s347 = sshll.u32 [#allocation8], 4
      %s348 = int_to_ptr.vmem [resolvable:$true] %s347
      %350 = dma.vmem_to_hbm [thread:$0]  %s348, 128, %s4, [#allocation4]
    $region33: #{tpu_custom_call.1} parent=1 // pred_fallthru
      _
    // Predicated region
    $region34: #{tpu_custom_call.1} parent=1 // pred_check
      _
    $region35: #{tpu_custom_call.1} parent=1 // pred_check_branch
      %352 = sbr.rel (0) target = $region37
    $region36: #{tpu_custom_call.1} parent=1 // pred_region
      %353 = dma.done [#allocation4], 128
    $region37: #{tpu_custom_call.1} parent=1 // pred_fallthru
      _
    %354 = vsyncpa [#allocation3], 1
    %355 = vsyncpa [#allocation6], 1
    %356 = vsyncpa [#allocation4], 1

</llo_original>
